<compile_context>
chip_gen: v5e
topology: v5e:2x2
jax: 0.10.0
libtpu: 0.0.40
codegen_flags: <defaults>
</compile_context>

<pallas_src>
import math

import jax
import jax.numpy as jnp
from jax.experimental import pallas as pl
from jax.experimental.pallas import tpu as pltpu


def _full_spec(a):
    nd = a.ndim
    return pl.BlockSpec(a.shape, lambda *_: (0,) * nd)


# ----------------------------------------------------------------------------
# Kernel 1 (fused): masked per-channel foreground stats + AdaIN converter
#   (F2All_Converter hot path) in a single pallas_call.
# ----------------------------------------------------------------------------
def _adain_fused_kernel(feat_ref, mask_ref, temb_ref, txt_ref,
                        mb_ref, vb_ref,
                        w1t_ref, w1x_ref, b1_ref, wh_ref, bh_ref,
                        om_ref, ov_ref):
    feat = feat_ref[...].astype(jnp.float32)       # [B, C, N]   (N on lanes)
    mask = mask_ref[...].astype(jnp.float32)       # [B, 1, N]
    temb = temb_ref[...].astype(jnp.float32)       # [B, T]
    txt = txt_ref[...].astype(jnp.float32)         # [B, L, D]

    # --- one-pass masked per-channel stats over the lane axis N ---
    cnt = jnp.maximum(jnp.sum(mask, axis=-1), 1.0)               # [B, 1]
    inv = 1.0 / cnt
    fm = feat * mask                                             # [B, C, N]
    s1 = jnp.sum(fm, axis=-1)                                    # [B, C]
    s2 = jnp.sum(fm * feat, axis=-1)                             # [B, C]
    fg_mean = s1 * inv
    fg_var = jnp.maximum(s2 * inv - fg_mean * fg_mean, 0.0)

    # --- condition MLP: SiLU([time, mean(text)] @ W1 + b1), no in-kernel concat
    L = txt.shape[1]
    txt_mean = jnp.sum(txt, axis=1) * (1.0 / L)                  # [B, D]
    h = (jnp.dot(temb, w1t_ref[...], preferred_element_type=jnp.float32)
         + jnp.dot(txt_mean, w1x_ref[...], preferred_element_type=jnp.float32)
         + b1_ref[...])                                          # [B, hidden]
    h = h * pl.reciprocal(1.0 + jnp.exp(-h), approx=True)        # SiLU

    # --- fused heads: one [hidden, 4C] matmul -> gamma/beta for mean & var ---
    heads = (jnp.dot(h, wh_ref[...], preferred_element_type=jnp.float32)
             + bh_ref[...])                                      # [B, 4C]
    C = om_ref.shape[-1]
    gm = heads[:, 0 * C:1 * C]
    bm = heads[:, 1 * C:2 * C]
    gv = heads[:, 2 * C:3 * C]
    bv = heads[:, 3 * C:4 * C]

    m = mb_ref[...].astype(jnp.float32) + fg_mean
    v = vb_ref[...].astype(jnp.float32) + fg_var
    om_ref[...] = (1.0 + gm) * m + bm
    z = (1.0 + gv) * v + bv
    # stable softplus using only exp/log/max (safe to lower on TPU)
    ov_ref[...] = jnp.maximum(z, 0.0) + jnp.log(1.0 + jnp.exp(-jnp.abs(z)))


def adain_fused(feat_bcn, mask_b1n, time_embed, text_embed,
                mean_bank, var_bank, params):
    B, C = mean_bank.shape
    args = (feat_bcn, mask_b1n, time_embed, text_embed, mean_bank, var_bank,
            params["w1t"], params["w1x"], params["b1"],
            params["wh"], params["bh"])
    out_m, out_v = pl.pallas_call(
        _adain_fused_kernel,
        out_shape=(jax.ShapeDtypeStruct((B, C), jnp.float32),
                   jax.ShapeDtypeStruct((B, C), jnp.float32)),
        grid=(1,),
        in_specs=[_full_spec(a) for a in args],
        out_specs=(pl.BlockSpec((B, C), lambda *_: (0, 0)),
                   pl.BlockSpec((B, C), lambda *_: (0, 0))),
    )(*args)
    return out_m, out_v


# ----------------------------------------------------------------------------
# Kernel 2: AggregationNet hot path — time-modulated cross-attention of
#   spatial tokens over text tokens, entirely in [C, N] (lane-dense) layout.
#   One grid step per batch element ("parallel" -> both TCs on v7x).
# ----------------------------------------------------------------------------
def _attn_kernel(x_ref, txt_ref, temb_ref, wt_ref, bt_ref,
                 wq_ref, wkv_ref, wo_ref, out_ref):
    x = x_ref[0].astype(jnp.float32)          # [C, N]   (N on lanes)
    txt = txt_ref[0].astype(jnp.float32)      # [L, D]
    temb = temb_ref[0].astype(jnp.float32)    # [1, T]

    # time modulation, produced directly as a [C, 1] column (sublane-aligned)
    scale = jax.lax.dot_general(wt_ref[...], temb, (((0,), (1,)), ((), ())),
                                preferred_element_type=jnp.float32)   # [C, 1]
    scale = scale + bt_ref[...]
    scale = scale * pl.reciprocal(1.0 + jnp.exp(-scale), approx=True)  # SiLU
    xm = x * (1.0 + scale)                                            # [C, N]

    dk = wq_ref.shape[-1]
    # q^T : [dk, N]
    q_t = jax.lax.dot_general(wq_ref[...], xm, (((0,), (0,)), ((), ())),
                              preferred_element_type=jnp.float32)
    # fused K/V projection: one matmul on txt -> [L, 2*dk]
    kv = jnp.dot(txt, wkv_ref[...], preferred_element_type=jnp.float32)
    k = kv[:, :dk]                                                    # [L, dk]
    v = kv[:, dk:]                                                    # [L, dk]

    # scores transposed: [L, N]  (L on sublanes, N lane-dense)
    s = jax.lax.dot_general(k, q_t, (((1,), (0,)), ((), ())),
                            preferred_element_type=jnp.float32)
    s = s * (1.0 / math.sqrt(dk))
    s = s - jnp.max(s, axis=0, keepdims=True)
    p = jnp.exp(s)
    p = p * pl.reciprocal(jnp.sum(p, axis=0, keepdims=True), approx=True)

    # o^T = v^T @ p : [dk, N]
    o_t = jax.lax.dot_general(v, p, (((0,), (0,)), ((), ())),
                              preferred_element_type=jnp.float32)
    # proj = wo^T @ o^T : [C, N]  (lane-dense result)
    proj = jax.lax.dot_general(wo_ref[...], o_t, (((0,), (0,)), ((), ())),
                               preferred_element_type=jnp.float32)
    out_ref[0] = (xm + proj).astype(out_ref.dtype)                    # residual


def aggregation_attention(x_bcn, text_embed, time_embed, params):
    B, C, N = x_bcn.shape
    _, L, D = text_embed.shape
    T = time_embed.shape[-1]
    wt, bt, wq, wkv, wo = (params["wt"], params["bt"], params["wq"],
                           params["wkv"], params["wo"])
    temb3 = time_embed.reshape(B, 1, T)
    out = pl.pallas_call(
        _attn_kernel,
        out_shape=jax.ShapeDtypeStruct((B, C, N), jnp.float32),
        grid=(B,),
        in_specs=[pl.BlockSpec((1, C, N), lambda b: (b, 0, 0)),
                  pl.BlockSpec((1, L, D), lambda b: (b, 0, 0)),
                  pl.BlockSpec((1, 1, T), lambda b: (b, 0, 0)),
                  pl.BlockSpec(wt.shape, lambda b: (0, 0)),
                  pl.BlockSpec(bt.shape, lambda b: (0, 0)),
                  pl.BlockSpec(wq.shape, lambda b: (0, 0)),
                  pl.BlockSpec(wkv.shape, lambda b: (0, 0)),
                  pl.BlockSpec(wo.shape, lambda b: (0, 0))],
        out_specs=pl.BlockSpec((1, C, N), lambda b: (b, 0, 0)),
        compiler_params=pltpu.CompilerParams(
            dimension_semantics=("parallel",)),
    )(x_bcn, text_embed, temb3, wt, bt, wq, wkv, wo)
    return out


# ----------------------------------------------------------------------------
# ConverterNetwork: deterministic parameters + forward glue
# ----------------------------------------------------------------------------
class ConverterNetworkPallas:
    def __init__(self, C, T, D, hidden=64, dk=32, seed=0):
        key = jax.random.PRNGKey(seed)
        ks = jax.random.split(key, 16)
        sc = 0.02
        # F2All_Converter (adain_net) parameters — W1 split (time/text parts),
        # the four heads fused into one [hidden, 4C] projection.
        self.adain_params = dict(
            w1t=jax.random.normal(ks[0], (T, hidden), jnp.float32) * sc,
            w1x=jax.random.normal(ks[1], (D, hidden), jnp.float32) * sc,
            b1=jnp.zeros((1, hidden), jnp.float32),
            wh=jax.random.normal(ks[2], (hidden, 4 * C), jnp.float32) * sc,
            bh=jnp.zeros((1, 4 * C), jnp.float32),
        )
        # AggregationNet (attn_net) parameters — K/V fused into one weight.
        self.attn_params = dict(
            wt=jax.random.normal(ks[5], (T, C), jnp.float32) * sc,
            bt=jnp.zeros((C, 1), jnp.float32),
            wq=jax.random.normal(ks[6], (C, dk), jnp.float32) * sc,
            wkv=jax.random.normal(ks[7], (D, 2 * dk), jnp.float32) * sc,
            wo=jax.random.normal(ks[9], (dk, C), jnp.float32) * sc,
        )

    # ---- F2All_Converter (single fused pallas_call) --------------------------
    def _adain_net(self, mean_bank, var_bank, feat_bank, time_embed,
                   text_embed, foreground_mask):
        B, C, H, W = feat_bank.shape
        feat = feat_bank.reshape(B, C, H * W)          # [B, C, N], no transpose
        mask = foreground_mask.reshape(B, 1, H * W)    # [B, 1, N]
        return adain_fused(feat, mask, time_embed, text_embed,
                           mean_bank, var_bank, self.adain_params)

    # ---- AggregationNet -------------------------------------------------------
    def _attn_net(self, inputs, text_embed, time_embed):
        B, C, H, W = inputs.shape
        x_bcn = inputs.reshape(B, C, H * W)            # [B, C, N], no transpose
        out = aggregation_attention(x_bcn, text_embed, time_embed,
                                    self.attn_params)
        # converted fg attention bank kept in conv layout [B, C, H, W]
        # TODO(synk): confirm the original AggregationNet output layout.
        return [out.reshape(B, C, H, W)]

    # ---- ConverterNetwork.forward ---------------------------------------------
    def __call__(self, mean_bank, var_bank, feat_bank, time_embed, text_embed,
                 foreground_mask, inputs, use_seperate=None):
        if use_seperate == "adaIN":
            fg2all_mean_bank, fg2all_variance_bank = self._adain_net(
                mean_bank, var_bank, feat_bank, time_embed, text_embed,
                foreground_mask)
            converted_fg_attn_banks_list = None
        elif use_seperate == "attn":
            converted_fg_attn_banks_list = self._attn_net(
                inputs, text_embed, time_embed)
            fg2all_mean_bank = None
            fg2all_variance_bank = None
        else:
            fg2all_mean_bank, fg2all_variance_bank = self._adain_net(
                mean_bank, var_bank, feat_bank, time_embed, text_embed,
                foreground_mask)
            converted_fg_attn_banks_list = self._attn_net(
                inputs, text_embed, time_embed)
        return (fg2all_mean_bank, fg2all_variance_bank,
                converted_fg_attn_banks_list)


# ----------------------------------------------------------------------------
if __name__ == "__main__":
    B, C, H, W = 2, 8, 16, 16
    T, D, L = 32, 32, 8

    key = jax.random.PRNGKey(0)
    k = jax.random.split(key, 7)
    mean_bank = jax.random.normal(k[0], (B, C), jnp.float32)
    var_bank = jax.nn.softplus(jax.random.normal(k[1], (B, C), jnp.float32))
    feat_bank = jax.random.normal(k[2], (B, C, H, W), jnp.float32)
    time_embed = jax.random.normal(k[3], (B, T), jnp.float32)
    text_embed = jax.random.normal(k[4], (B, L, D), jnp.float32)
    foreground_mask = (jax.random.uniform(k[5], (B, 1, H, W)) > 0.5).astype(
        jnp.float32)
    inputs = jax.random.normal(k[6], (B, C, H, W), jnp.float32)

    net = ConverterNetworkPallas(C=C, T=T, D=D, hidden=64, dk=32, seed=0)

    fg2all_mean, fg2all_var, attn_list = net(
        mean_bank, var_bank, feat_bank, time_embed, text_embed,
        foreground_mask, inputs, use_seperate=None)

    jax.block_until_ready((fg2all_mean, fg2all_var, attn_list))
    assert fg2all_mean.shape == (B, C)
    assert fg2all_var.shape == (B, C)
    assert attn_list[0].shape == (B, C, H, W)
    assert bool(jnp.all(jnp.isfinite(fg2all_mean)))
    assert bool(jnp.all(jnp.isfinite(fg2all_var)))
    assert bool(jnp.all(jnp.isfinite(attn_list[0])))
    print("KERNEL_OK")
</pallas_src>

<mosaic_0001>
module attributes {stable_mosaic.version = 11 : i64} {
  func.func @_adain_fused_kernel(%arg0: i32, %arg1: memref<2x8x256xf32, #tpu.memory_space<vmem>>, %arg2: memref<2x1x256xf32, #tpu.memory_space<vmem>>, %arg3: memref<2x32xf32, #tpu.memory_space<vmem>>, %arg4: memref<2x8x32xf32, #tpu.memory_space<vmem>>, %arg5: memref<2x8xf32, #tpu.memory_space<vmem>>, %arg6: memref<2x8xf32, #tpu.memory_space<vmem>>, %arg7: memref<32x64xf32, #tpu.memory_space<vmem>>, %arg8: memref<32x64xf32, #tpu.memory_space<vmem>>, %arg9: memref<1x64xf32, #tpu.memory_space<vmem>>, %arg10: memref<64x32xf32, #tpu.memory_space<vmem>>, %arg11: memref<1x32xf32, #tpu.memory_space<vmem>>, %arg12: memref<2x8xf32, #tpu.memory_space<vmem>>, %arg13: memref<2x8xf32, #tpu.memory_space<vmem>>) attributes {dimension_semantics = [#tpu.dimension_semantics<arbitrary>], iteration_bounds = array<i64: 1>, scalar_prefetch = 0 : i64, scratch_operands = 0 : i64, tpu.core_type = #tpu.core_type<tc>, window_params = [{pipeline_mode = #tpu.pipeline_mode<synchronous>, transform_indices = @transform_0, window_bounds = array<i64: 2, 8, 256>}, {pipeline_mode = #tpu.pipeline_mode<synchronous>, transform_indices = @transform_1, window_bounds = array<i64: 2, 1, 256>}, {pipeline_mode = #tpu.pipeline_mode<synchronous>, transform_indices = @transform_2, window_bounds = array<i64: 2, 32>}, {pipeline_mode = #tpu.pipeline_mode<synchronous>, transform_indices = @transform_3, window_bounds = array<i64: 2, 8, 32>}, {pipeline_mode = #tpu.pipeline_mode<synchronous>, transform_indices = @transform_4, window_bounds = array<i64: 2, 8>}, {pipeline_mode = #tpu.pipeline_mode<synchronous>, transform_indices = @transform_5, window_bounds = array<i64: 2, 8>}, {pipeline_mode = #tpu.pipeline_mode<synchronous>, transform_indices = @transform_6, window_bounds = array<i64: 32, 64>}, {pipeline_mode = #tpu.pipeline_mode<synchronous>, transform_indices = @transform_7, window_bounds = array<i64: 32, 64>}, {pipeline_mode = #tpu.pipeline_mode<synchronous>, transform_indices = @transform_8, window_bounds = array<i64: 1, 64>}, {pipeline_mode = #tpu.pipeline_mode<synchronous>, transform_indices = @transform_9, window_bounds = array<i64: 64, 32>}, {pipeline_mode = #tpu.pipeline_mode<synchronous>, transform_indices = @transform_10, window_bounds = array<i64: 1, 32>}, {pipeline_mode = #tpu.pipeline_mode<synchronous>, transform_indices = @transform_11, window_bounds = array<i64: 2, 8>}, {pipeline_mode = #tpu.pipeline_mode<synchronous>, transform_indices = @transform_12, window_bounds = array<i64: 2, 8>}]} {
    %c0 = arith.constant 0 : index
    %c0_0 = arith.constant 0 : index
    %c0_1 = arith.constant 0 : index
    %0 = vector.load %arg1[%c0, %c0_0, %c0_1] : memref<2x8x256xf32, #tpu.memory_space<vmem>>, vector<2x8x256xf32>
    %c0_2 = arith.constant 0 : index
    %c0_3 = arith.constant 0 : index
    %c0_4 = arith.constant 0 : index
    %1 = vector.load %arg2[%c0_2, %c0_3, %c0_4] : memref<2x1x256xf32, #tpu.memory_space<vmem>>, vector<2x1x256xf32>
    %c0_5 = arith.constant 0 : index
    %c0_6 = arith.constant 0 : index
    %2 = vector.load %arg3[%c0_5, %c0_6] : memref<2x32xf32, #tpu.memory_space<vmem>>, vector<2x32xf32>
    %c0_7 = arith.constant 0 : index
    %c0_8 = arith.constant 0 : index
    %c0_9 = arith.constant 0 : index
    %3 = vector.load %arg4[%c0_7, %c0_8, %c0_9] : memref<2x8x32xf32, #tpu.memory_space<vmem>>, vector<2x8x32xf32>
    %cst = arith.constant dense<0.000000e+00> : vector<2x1xf32>
    %4 = vector.multi_reduction <add>, %1, %cst [2] : vector<2x1x256xf32> to vector<2x1xf32>
    %cst_10 = arith.constant 1.000000e+00 : f32
    %5 = vector.broadcast %cst_10 : f32 to vector<2x1xf32>
    %6 = arith.maximumf %4, %5 : vector<2x1xf32>
    %cst_11 = arith.constant 1.000000e+00 : f32
    %7 = vector.broadcast %cst_11 : f32 to vector<2x1xf32>
    %8 = arith.divf %7, %6 : vector<2x1xf32>
    %9 = vector.broadcast %1 : vector<2x1x256xf32> to vector<2x8x256xf32>
    %10 = arith.mulf %0, %9 : vector<2x8x256xf32>
    %cst_12 = arith.constant dense<0.000000e+00> : vector<2x8xf32>
    %11 = vector.multi_reduction <add>, %10, %cst_12 [2] : vector<2x8x256xf32> to vector<2x8xf32>
    %12 = arith.mulf %10, %0 : vector<2x8x256xf32>
    %cst_13 = arith.constant dense<0.000000e+00> : vector<2x8xf32>
    %13 = vector.multi_reduction <add>, %12, %cst_13 [2] : vector<2x8x256xf32> to vector<2x8xf32>
    %14 = vector.broadcast %8 : vector<2x1xf32> to vector<2x8xf32>
    %15 = arith.mulf %11, %14 : vector<2x8xf32>
    %16 = vector.broadcast %8 : vector<2x1xf32> to vector<2x8xf32>
    %17 = arith.mulf %13, %16 : vector<2x8xf32>
    %18 = arith.mulf %15, %15 : vector<2x8xf32>
    %19 = arith.subf %17, %18 : vector<2x8xf32>
    %cst_14 = arith.constant 0.000000e+00 : f32
    %20 = vector.broadcast %cst_14 : f32 to vector<2x8xf32>
    %21 = arith.maximumf %19, %20 : vector<2x8xf32>
    %cst_15 = arith.constant dense<0.000000e+00> : vector<2x32xf32>
    %22 = vector.multi_reduction <add>, %3, %cst_15 [1] : vector<2x8x32xf32> to vector<2x32xf32>
    %cst_16 = arith.constant 1.250000e-01 : f32
    %23 = vector.broadcast %cst_16 : f32 to vector<2x32xf32>
    %24 = arith.mulf %22, %23 : vector<2x32xf32>
    %c0_17 = arith.constant 0 : index
    %c0_18 = arith.constant 0 : index
    %25 = vector.load %arg7[%c0_17, %c0_18] : memref<32x64xf32, #tpu.memory_space<vmem>>, vector<32x64xf32>
    %cst_19 = arith.constant dense<0.000000e+00> : vector<2x64xf32>
    %26 = tpu.matmul %2, %25, %cst_19 {dimension_numbers = #tpu.dot_dimension_numbers<[1], [0], [0], [1], [0, 0, 1, 1], [], []>} : vector<2x32xf32>, vector<32x64xf32>, vector<2x64xf32> -> vector<2x64xf32>
    %c0_20 = arith.constant 0 : index
    %c0_21 = arith.constant 0 : index
    %27 = vector.load %arg8[%c0_20, %c0_21] : memref<32x64xf32, #tpu.memory_space<vmem>>, vector<32x64xf32>
    %cst_22 = arith.constant dense<0.000000e+00> : vector<2x64xf32>
    %28 = tpu.matmul %24, %27, %cst_22 {dimension_numbers = #tpu.dot_dimension_numbers<[1], [0], [0], [1], [0, 0, 1, 1], [], []>} : vector<2x32xf32>, vector<32x64xf32>, vector<2x64xf32> -> vector<2x64xf32>
    %29 = arith.addf %26, %28 : vector<2x64xf32>
    %c0_23 = arith.constant 0 : index
    %c0_24 = arith.constant 0 : index
    %30 = vector.load %arg9[%c0_23, %c0_24] : memref<1x64xf32, #tpu.memory_space<vmem>>, vector<1x64xf32>
    %31 = vector.broadcast %30 : vector<1x64xf32> to vector<2x64xf32>
    %32 = arith.addf %29, %31 : vector<2x64xf32>
    %cst_25 = arith.constant 0.000000e+00 : f32
    %33 = vector.broadcast %cst_25 : f32 to vector<2x64xf32>
    %34 = arith.subf %33, %32 : vector<2x64xf32>
    %35 = math.exp %34 : vector<2x64xf32>
    %cst_26 = arith.constant 1.000000e+00 : f32
    %36 = vector.broadcast %cst_26 : f32 to vector<2x64xf32>
    %37 = arith.addf %36, %35 : vector<2x64xf32>
    %38 = tpu.reciprocal %37 {approx = true} : vector<2x64xf32> -> vector<2x64xf32>
    %39 = arith.mulf %32, %38 : vector<2x64xf32>
    %c0_27 = arith.constant 0 : index
    %c0_28 = arith.constant 0 : index
    %40 = vector.load %arg10[%c0_27, %c0_28] : memref<64x32xf32, #tpu.memory_space<vmem>>, vector<64x32xf32>
    %cst_29 = arith.constant dense<0.000000e+00> : vector<2x32xf32>
    %41 = tpu.matmul %39, %40, %cst_29 {dimension_numbers = #tpu.dot_dimension_numbers<[1], [0], [0], [1], [0, 0, 1, 1], [], []>} : vector<2x64xf32>, vector<64x32xf32>, vector<2x32xf32> -> vector<2x32xf32>
    %c0_30 = arith.constant 0 : index
    %c0_31 = arith.constant 0 : index
    %42 = vector.load %arg11[%c0_30, %c0_31] : memref<1x32xf32, #tpu.memory_space<vmem>>, vector<1x32xf32>
    %43 = vector.broadcast %42 : vector<1x32xf32> to vector<2x32xf32>
    %44 = arith.addf %41, %43 : vector<2x32xf32>
    %45 = vector.extract_strided_slice %44 {offsets = [0, 0], sizes = [2, 8], strides = [1, 1]} : vector<2x32xf32> to vector<2x8xf32>
    %46 = vector.extract_strided_slice %44 {offsets = [0, 8], sizes = [2, 8], strides = [1, 1]} : vector<2x32xf32> to vector<2x8xf32>
    %47 = vector.extract_strided_slice %44 {offsets = [0, 16], sizes = [2, 8], strides = [1, 1]} : vector<2x32xf32> to vector<2x8xf32>
    %48 = vector.extract_strided_slice %44 {offsets = [0, 24], sizes = [2, 8], strides = [1, 1]} : vector<2x32xf32> to vector<2x8xf32>
    %c0_32 = arith.constant 0 : index
    %c0_33 = arith.constant 0 : index
    %49 = vector.load %arg5[%c0_32, %c0_33] : memref<2x8xf32, #tpu.memory_space<vmem>>, vector<2x8xf32>
    %50 = arith.addf %49, %15 : vector<2x8xf32>
    %c0_34 = arith.constant 0 : index
    %c0_35 = arith.constant 0 : index
    %51 = vector.load %arg6[%c0_34, %c0_35] : memref<2x8xf32, #tpu.memory_space<vmem>>, vector<2x8xf32>
    %52 = arith.addf %51, %21 : vector<2x8xf32>
    %cst_36 = arith.constant 1.000000e+00 : f32
    %53 = vector.broadcast %cst_36 : f32 to vector<2x8xf32>
    %54 = arith.addf %53, %45 : vector<2x8xf32>
    %55 = arith.mulf %54, %50 : vector<2x8xf32>
    %56 = arith.addf %55, %46 : vector<2x8xf32>
    %c0_37 = arith.constant 0 : index
    %c0_38 = arith.constant 0 : index
    %57 = vector.load %arg12[%c0_37, %c0_38] : memref<2x8xf32, #tpu.memory_space<vmem>>, vector<2x8xf32>
    tpu.vector_store %arg12[%c0_37, %c0_38], %56 {strides = array<i32>} : memref<2x8xf32, #tpu.memory_space<vmem>>, vector<2x8xf32>,
    %cst_39 = arith.constant 1.000000e+00 : f32
    %58 = vector.broadcast %cst_39 : f32 to vector<2x8xf32>
    %59 = arith.addf %58, %47 : vector<2x8xf32>
    %60 = arith.mulf %59, %52 : vector<2x8xf32>
    %61 = arith.addf %60, %48 : vector<2x8xf32>
    %cst_40 = arith.constant 0.000000e+00 : f32
    %62 = vector.broadcast %cst_40 : f32 to vector<2x8xf32>
    %63 = arith.maximumf %61, %62 : vector<2x8xf32>
    %64 = math.absf %61 : vector<2x8xf32>
    %cst_41 = arith.constant 0.000000e+00 : f32
    %65 = vector.broadcast %cst_41 : f32 to vector<2x8xf32>
    %66 = arith.subf %65, %64 : vector<2x8xf32>
    %67 = math.exp %66 : vector<2x8xf32>
    %cst_42 = arith.constant 1.000000e+00 : f32
    %68 = vector.broadcast %cst_42 : f32 to vector<2x8xf32>
    %69 = arith.addf %68, %67 : vector<2x8xf32>
    %70 = math.log %69 : vector<2x8xf32>
    %71 = arith.addf %63, %70 : vector<2x8xf32>
    %c0_43 = arith.constant 0 : index
    %c0_44 = arith.constant 0 : index
    %72 = vector.load %arg13[%c0_43, %c0_44] : memref<2x8xf32, #tpu.memory_space<vmem>>, vector<2x8xf32>
    tpu.vector_store %arg13[%c0_43, %c0_44], %71 {strides = array<i32>} : memref<2x8xf32, #tpu.memory_space<vmem>>, vector<2x8xf32>,
    return
  }
  func.func @transform_0(%arg0: i32) -> (i32, i32, i32) {
    %c0_i32 = arith.constant 0 : i32
    %c0_i32_0 = arith.constant 0 : i32
    %c0_i32_1 = arith.constant 0 : i32
    %c0_i32_2 = arith.constant 0 : i32
    return %c0_i32, %c0_i32_0, %c0_i32_1 : i32, i32, i32
  }
  func.func @transform_1(%arg0: i32) -> (i32, i32, i32) {
    %c0_i32 = arith.constant 0 : i32
    %c0_i32_0 = arith.constant 0 : i32
    %c0_i32_1 = arith.constant 0 : i32
    %c0_i32_2 = arith.constant 0 : i32
    return %c0_i32, %c0_i32_0, %c0_i32_1 : i32, i32, i32
  }
  func.func @transform_2(%arg0: i32) -> (i32, i32) {
    %c0_i32 = arith.constant 0 : i32
    %c0_i32_0 = arith.constant 0 : i32
    %c0_i32_1 = arith.constant 0 : i32
    return %c0_i32, %c0_i32_0 : i32, i32
  }
  func.func @transform_3(%arg0: i32) -> (i32, i32, i32) {
    %c0_i32 = arith.constant 0 : i32
    %c0_i32_0 = arith.constant 0 : i32
    %c0_i32_1 = arith.constant 0 : i32
    %c0_i32_2 = arith.constant 0 : i32
    return %c0_i32, %c0_i32_0, %c0_i32_1 : i32, i32, i32
  }
  func.func @transform_4(%arg0: i32) -> (i32, i32) {
    %c0_i32 = arith.constant 0 : i32
    %c0_i32_0 = arith.constant 0 : i32
    %c0_i32_1 = arith.constant 0 : i32
    return %c0_i32, %c0_i32_0 : i32, i32
  }
  func.func @transform_5(%arg0: i32) -> (i32, i32) {
    %c0_i32 = arith.constant 0 : i32
    %c0_i32_0 = arith.constant 0 : i32
    %c0_i32_1 = arith.constant 0 : i32
    return %c0_i32, %c0_i32_0 : i32, i32
  }
  func.func @transform_6(%arg0: i32) -> (i32, i32) {
    %c0_i32 = arith.constant 0 : i32
    %c0_i32_0 = arith.constant 0 : i32
    %c0_i32_1 = arith.constant 0 : i32
    return %c0_i32, %c0_i32_0 : i32, i32
  }
  func.func @transform_7(%arg0: i32) -> (i32, i32) {
    %c0_i32 = arith.constant 0 : i32
    %c0_i32_0 = arith.constant 0 : i32
    %c0_i32_1 = arith.constant 0 : i32
    return %c0_i32, %c0_i32_0 : i32, i32
  }
  func.func @transform_8(%arg0: i32) -> (i32, i32) {
    %c0_i32 = arith.constant 0 : i32
    %c0_i32_0 = arith.constant 0 : i32
    %c0_i32_1 = arith.constant 0 : i32
    return %c0_i32, %c0_i32_0 : i32, i32
  }
  func.func @transform_9(%arg0: i32) -> (i32, i32) {
    %c0_i32 = arith.constant 0 : i32
    %c0_i32_0 = arith.constant 0 : i32
    %c0_i32_1 = arith.constant 0 : i32
    return %c0_i32, %c0_i32_0 : i32, i32
  }
  func.func @transform_10(%arg0: i32) -> (i32, i32) {
    %c0_i32 = arith.constant 0 : i32
    %c0_i32_0 = arith.constant 0 : i32
    %c0_i32_1 = arith.constant 0 : i32
    return %c0_i32, %c0_i32_0 : i32, i32
  }
  func.func @transform_11(%arg0: i32) -> (i32, i32) {
    %c0_i32 = arith.constant 0 : i32
    %c0_i32_0 = arith.constant 0 : i32
    %c0_i32_1 = arith.constant 0 : i32
    return %c0_i32, %c0_i32_0 : i32, i32
  }
  func.func @transform_12(%arg0: i32) -> (i32, i32) {
    %c0_i32 = arith.constant 0 : i32
    %c0_i32_0 = arith.constant 0 : i32
    %c0_i32_1 = arith.constant 0 : i32
    return %c0_i32, %c0_i32_0 : i32, i32
  }
}

</mosaic_0001>

<llo_original>
// kernel: tpu_custom_call.1
$region0: #{tpu_custom_call.1}
  #allocation0 [shape = 'u32[]', space=smem, size = 0x4, offset = 0x4, fixed_abs, tag = 'smem constant byte address 0x4 - core index']
  #allocation1 [shape = 'u32[72,128]{1,0:T(1,128)}', space=vmem, size = 0x9000, scoped, tag = 'internal scratch']
  %s0 = inlined_call_operand.vmem [shape: f32[2,8,256], index: 0, kind: input, shape index: {}]
  %s1 = inlined_call_operand.hbm [shape: f32[2,1,256], index: 1, kind: input, shape index: {}]
  %s2 = inlined_call_operand.hbm [shape: f32[2,32], index: 2, kind: input, shape index: {}]
  %s3 = inlined_call_operand.hbm [shape: f32[2,8,32], index: 3, kind: input, shape index: {}]
  %s4 = inlined_call_operand.vmem [shape: f32[2,8], index: 4, kind: input, shape index: {}]
  %s5 = inlined_call_operand.hbm [shape: f32[2,8], index: 5, kind: input, shape index: {}]
  %s6 = inlined_call_operand.vmem [shape: f32[32,64], index: 6, kind: input, shape index: {}]
  %s7 = inlined_call_operand.vmem [shape: f32[32,64], index: 7, kind: input, shape index: {}]
  %s8 = inlined_call_operand.vmem [shape: f32[1,64], index: 8, kind: input, shape index: {}]
  %s9 = inlined_call_operand.vmem [shape: f32[64,32], index: 9, kind: input, shape index: {}]
  %s10 = inlined_call_operand.vmem [shape: f32[1,32], index: 10, kind: input, shape index: {}]
  %s11 = inlined_call_operand.hbm [shape: f32[2,8], index: 11, kind: output, shape index: {0}]
  %s12 = inlined_call_operand.hbm [shape: f32[2,8], index: 12, kind: output, shape index: {1}]
  %13 = xla_tuple %s11, %s12
  %s14 = sld [smem:[#allocation0]]
  $region78: #{tpu_custom_call.1} parent=0
    _
  %s16 = ssub.s32 1, %s14
  %s17 = scalar_select 0, %s16, %s14
  $region1: #{tpu_custom_call.1} parent=0
    #allocation2 [shape = 'u8[2048]{0}', space=vmem, size = 0x800, scoped, tag = 'input window, operand 1, single buffered']
    #allocation3 [shape = 's32[1]{0}', space=sflag, size = 0x4, scoped, tag = 'scoped memory for tpu_custom_call.1']
    #allocation4 [shape = 's32[1]{0}', space=sflag, size = 0x4, scoped, tag = 'scoped memory for tpu_custom_call.1']
    #allocation5 [shape = 'u8[1024]{0}', space=vmem, size = 0x400, scoped, tag = 'input window, operand 2, single buffered']
    #allocation6 [shape = 's32[1]{0}', space=sflag, size = 0x4, scoped, tag = 'scoped memory for tpu_custom_call.1']
    #allocation7 [shape = 'u8[8192]{0}', space=vmem, size = 0x2000, scoped, tag = 'input window, operand 3, single buffered']
    #allocation8 [shape = 'u8[1024]{0}', space=vmem, size = 0x400, scoped, tag = 'input window, operand 5, single buffered']
    #allocation9 [shape = 's32[1]{0}', space=sflag, size = 0x4, scoped, tag = 'scoped memory for tpu_custom_call.1']
    #allocation10 [shape = 'u8[1024]{0}', space=vmem, size = 0x400, scoped, tag = 'output window, operand 0, single buffered']
    #allocation11 [shape = 'u8[1024]{0}', space=vmem, size = 0x400, scoped, tag = 'output window, operand 1, single buffered']
    #allocation12 [shape = 's32[1]{0}', space=sflag, size = 0x4, scoped, tag = 'scoped memory for tpu_custom_call.1']
    %18 = vsyncpa [#allocation3], 0
    %19 = vsyncpa [#allocation6], 0
    %20 = vsyncpa [#allocation9], 0
    %21 = vsyncpa [#allocation4], 0
    %22 = vsyncpa [#allocation12], 0
    // Predicated region
    $region2: #{tpu_custom_call.1} parent=1 // pred_check
      _
    $region3: #{tpu_custom_call.1} parent=1 // pred_check_branch
      %24 = sbr.rel (0) target = $region5
    $region4: #{tpu_custom_call.1} parent=1 // pred_region
      _
    $region5: #{tpu_custom_call.1} parent=1 // pred_fallthru
      _
    // Predicated region
    $region6: #{tpu_custom_call.1} parent=1 // pred_check
      _
    $region7: #{tpu_custom_call.1} parent=1 // pred_check_branch
      %26 = sbr.rel (0) target = $region9
    $region8: #{tpu_custom_call.1} parent=1 // pred_region
      %28 = vsyncadd [#allocation3], 0
      %s29 = sshll.u32 %s1, 4
      %s30 = int_to_ptr.hbm [resolvable:$true] %s29
      %s31 = sshll.u32 [#allocation2], 4
      %s32 = int_to_ptr.vmem [resolvable:$true] %s31
      %37 = dma.hbm_to_vmem [thread:$0]  %s30, 64, %s32, [#allocation3], 32, 32, 2
    $region9: #{tpu_custom_call.1} parent=1 // pred_fallthru
      _
    // Predicated region
    $region10: #{tpu_custom_call.1} parent=1 // pred_check
      _
    $region11: #{tpu_custom_call.1} parent=1 // pred_check_branch
      %39 = sbr.rel (0) target = $region13
    $region12: #{tpu_custom_call.1} parent=1 // pred_region
      %41 = vsyncadd [#allocation6], 0
      %s43 = sshll.u32 %s2, 4
      %s44 = int_to_ptr.hbm [resolvable:$true] %s43
      %s45 = sshll.u32 [#allocation5], 4
      %s46 = int_to_ptr.vmem [resolvable:$true] %s45
      %48 = dma.hbm_to_vmem [thread:$0]  %s44, 32, %s46, [#allocation6]
    $region13: #{tpu_custom_call.1} parent=1 // pred_fallthru
      _
    // Predicated region
    $region14: #{tpu_custom_call.1} parent=1 // pred_check
      _
    $region15: #{tpu_custom_call.1} parent=1 // pred_check_branch
      %50 = sbr.rel (0) target = $region17
    $region16: #{tpu_custom_call.1} parent=1 // pred_region
      %52 = vsyncadd [#allocation6], 0
      %s53 = sshll.u32 %s3, 4
      %s54 = int_to_ptr.hbm [resolvable:$true] %s53
      %s55 = sshll.u32 [#allocation7], 4
      %s56 = int_to_ptr.vmem [resolvable:$true] %s55
      %61 = dma.hbm_to_vmem [thread:$0]  %s54, 256, %s56, [#allocation6], 128, 128, 8
    $region17: #{tpu_custom_call.1} parent=1 // pred_fallthru
      _
    // Predicated region
    $region18: #{tpu_custom_call.1} parent=1 // pred_check
      _
    $region19: #{tpu_custom_call.1} parent=1 // pred_check_branch
      %63 = sbr.rel (0) target = $region21
    $region20: #{tpu_custom_call.1} parent=1 // pred_region
      _
    $region21: #{tpu_custom_call.1} parent=1 // pred_fallthru
      _
    // Predicated region
    $region22: #{tpu_custom_call.1} parent=1 // pred_check
      _
    $region23: #{tpu_custom_call.1} parent=1 // pred_check_branch
      %65 = sbr.rel (0) target = $region25
    $region24: #{tpu_custom_call.1} parent=1 // pred_region
      %67 = vsyncadd [#allocation9], 0
      %s69 = sshll.u32 %s5, 4
      %s70 = int_to_ptr.hbm [resolvable:$true] %s69
      %s71 = sshll.u32 [#allocation8], 4
      %s72 = int_to_ptr.vmem [resolvable:$true] %s71
      %74 = dma.hbm_to_vmem [thread:$0]  %s70, 32, %s72, [#allocation9]
    $region25: #{tpu_custom_call.1} parent=1 // pred_fallthru
      _
    // Predicated region
    $region26: #{tpu_custom_call.1} parent=1 // pred_check
      _
    $region27: #{tpu_custom_call.1} parent=1 // pred_check_branch
      %76 = sbr.rel (0) target = $region29
    $region28: #{tpu_custom_call.1} parent=1 // pred_region
      _
    $region29: #{tpu_custom_call.1} parent=1 // pred_fallthru
      _
    // Predicated region
    $region30: #{tpu_custom_call.1} parent=1 // pred_check
      _
    $region31: #{tpu_custom_call.1} parent=1 // pred_check_branch
      %78 = sbr.rel (0) target = $region33
    $region32: #{tpu_custom_call.1} parent=1 // pred_region
      _
    $region33: #{tpu_custom_call.1} parent=1 // pred_fallthru
      _
    // Predicated region
    $region34: #{tpu_custom_call.1} parent=1 // pred_check
      _
    $region35: #{tpu_custom_call.1} parent=1 // pred_check_branch
      %80 = sbr.rel (0) target = $region37
    $region36: #{tpu_custom_call.1} parent=1 // pred_region
      _
    $region37: #{tpu_custom_call.1} parent=1 // pred_fallthru
      _
    // Predicated region
    $region38: #{tpu_custom_call.1} parent=1 // pred_check
      _
    $region39: #{tpu_custom_call.1} parent=1 // pred_check_branch
      %82 = sbr.rel (0) target = $region41
    $region40: #{tpu_custom_call.1} parent=1 // pred_region
      _
    $region41: #{tpu_custom_call.1} parent=1 // pred_fallthru
      _
    // Predicated region
    $region42: #{tpu_custom_call.1} parent=1 // pred_check
      _
    $region43: #{tpu_custom_call.1} parent=1 // pred_check_branch
      %84 = sbr.rel (0) target = $region45
    $region44: #{tpu_custom_call.1} parent=1 // pred_region
      _
    $region45: #{tpu_custom_call.1} parent=1 // pred_fallthru
      _
    // Predicated region
    $region46: #{tpu_custom_call.1} parent=1 // pred_check
      _
    $region47: #{tpu_custom_call.1} parent=1 // pred_check_branch
      %86 = sbr.rel (0) target = $region49
    $region48: #{tpu_custom_call.1} parent=1 // pred_region
      %88 = dma.done [#allocation3], 64
    $region49: #{tpu_custom_call.1} parent=1 // pred_fallthru
      _
    // Predicated region
    $region50: #{tpu_custom_call.1} parent=1 // pred_check
      _
    $region51: #{tpu_custom_call.1} parent=1 // pred_check_branch
      %90 = sbr.rel (0) target = $region53
    $region52: #{tpu_custom_call.1} parent=1 // pred_region
      %92 = dma.done [#allocation6], 32
    $region53: #{tpu_custom_call.1} parent=1 // pred_fallthru
      _
    // Predicated region
    $region54: #{tpu_custom_call.1} parent=1 // pred_check
      _
    $region55: #{tpu_custom_call.1} parent=1 // pred_check_branch
      %94 = sbr.rel (0) target = $region57
    $region56: #{tpu_custom_call.1} parent=1 // pred_region
      %96 = dma.done [#allocation6], 256
    $region57: #{tpu_custom_call.1} parent=1 // pred_fallthru
      _
    // Predicated region
    $region58: #{tpu_custom_call.1} parent=1 // pred_check
      _
    $region59: #{tpu_custom_call.1} parent=1 // pred_check_branch
      %98 = sbr.rel (0) target = $region61
    $region60: #{tpu_custom_call.1} parent=1 // pred_region
      %100 = dma.done [#allocation9], 32
    $region61: #{tpu_custom_call.1} parent=1 // pred_fallthru
      _
    %v101 = vld [vmem:[%s0] sm:$0xff]
    %v102 = vld [vmem:[%s0 + $0x8] sm:$0xff]
    %v103 = vld [vmem:[%s0 + $0x10] sm:$0xff]
    %v104 = vld [vmem:[%s0 + $0x18] sm:$0xff]
    %v105 = vld [vmem:[#allocation2] sm:$0x3]
    %v106 = vld [vmem:[#allocation2 + $0x2] sm:$0x3]
    %v107 = vld [vmem:[#allocation5] sm:$0x3]
    %v108 = vld [vmem:[#allocation7] sm:$0xff]
    %v109 = vld [vmem:[#allocation7 + $0x8] sm:$0xff]
    %v112 = vperm.slane %v105, 0
    %v113 = vperm.slane %v105, 1
    %v114 = vperm.slane %v106, 0
    %v115 = vperm.slane %v106, 1
    %vm120 = vcmask 1040384
    %v121 = vsel %vm120, %v112, 0.0
    %v122 = vsel %vm120, %v113, 0.0
    %v123 = vadd.f32 %v121, %v122
    %124 = vadd.xlane.f32.xlu0 %v123
    %v125 = vpop.xlane.xlu0 %124
    %v126 = vsel %vm120, %v114, 0.0
    %v127 = vsel %vm120, %v115, 0.0
    %v128 = vadd.f32 %v126, %v127
    %129 = vadd.xlane.f32.xlu0 %v128
    %v130 = vpop.xlane.xlu0 %129
    %v131 = vmax.f32 %v125, 1.0
    %v132 = vmax.f32 %v130, 1.0
    %v133 = vrcp.pop %v131
    %v134 = vmul.f32 %v131, %v133
    %v135 = vsub.f32 1.0, %v134
    %v136 = vmul.f32 %v133, %v135
    %v137 = vadd.f32 %v133, %v136
    %vm138 = vweird.f32 %v131
    %vm139 = vweird.f32 %v133
    %vm140 = vmor %vm138, %vm139
    %v141 = vsel %vm140, %v133, %v137
    %v142 = vand.u32 2147483647, %v131
    %vm143 = vcmp.eq.f32.partialorder %v142, 8.507059e+37
    %v144 = vand.u32 %v131, 2147483648
    %v145 = vor.u32 1.1754944e-38, %v144
    %v146 = vsel %vm143, %v145, %v141
    %v147 = vmul.f32 1.0, %v146
    %v148 = vrcp.pop %v132
    %v149 = vmul.f32 %v132, %v148
    %v150 = vsub.f32 1.0, %v149
    %v151 = vmul.f32 %v148, %v150
    %v152 = vadd.f32 %v148, %v151
    %vm153 = vweird.f32 %v132
    %vm154 = vweird.f32 %v148
    %vm155 = vmor %vm153, %vm154
    %v156 = vsel %vm155, %v148, %v152
    %v157 = vand.u32 2147483647, %v132
    %vm158 = vcmp.eq.f32.partialorder %v157, 8.507059e+37
    %v159 = vand.u32 %v132, 2147483648
    %v160 = vor.u32 1.1754944e-38, %v159
    %v161 = vsel %vm158, %v160, %v156
    %v162 = vmul.f32 1.0, %v161
    %v163 = vmul.f32 %v101, %v112
    %v164 = vmul.f32 %v102, %v113
    %v165 = vmul.f32 %v103, %v114
    %v166 = vmul.f32 %v104, %v115
    %v167 = vadd.f32 %v163, %v164
    %168 = vadd.xlane.f32.xlu0 %v167
    %v169 = vpop.xlane.xlu0 %168
    %v170 = vadd.f32 %v165, %v166
    %171 = vadd.xlane.f32.xlu0 %v170
    %v172 = vpop.xlane.xlu0 %171
    %v173 = vmul.f32 %v163, %v101
    %v174 = vmul.f32 %v164, %v102
    %v175 = vmul.f32 %v165, %v103
    %v176 = vmul.f32 %v166, %v104
    %v177 = vadd.f32 %v173, %v174
    %178 = vadd.xlane.f32.xlu0 %v177
    %v179 = vpop.xlane.xlu0 %178
    %v180 = vadd.f32 %v175, %v176
    %181 = vadd.xlane.f32.xlu0 %v180
    %v182 = vpop.xlane.xlu0 %181
    %v183 = vperm.slane %v147, 0
    %v184 = vperm.slane %v162, 0
    %v185 = vmul.f32 %v169, %v183
    %v186 = vmul.f32 %v172, %v184
    %v187 = vmul.f32 %v179, %v183
    %v188 = vmul.f32 %v182, %v184
    %v189 = vmul.f32 %v185, %v185
    %v190 = vmul.f32 %v186, %v186
    %v191 = vsub.f32 %v187, %v189
    %v192 = vsub.f32 %v188, %v190
    %v193 = vmax.f32 %v191, 0.0
    %v194 = vmax.f32 %v192, 0.0
    %vm195 = vcmask 261120
    %v196 = vsel %vm195, %v108, 0.0
    %v197 = vrot.slane %v196, 4
    %v198 = vadd.f32 %v196, %v197
    %v199 = vrot.slane %v198, 2
    %v200 = vadd.f32 %v198, %v199
    %v201 = vrot.slane %v200, 1
    %v202 = vadd.f32 %v200, %v201
    %v203 = vsel %vm195, %v109, 0.0
    %v204 = vrot.slane %v203, 4
    %v205 = vadd.f32 %v203, %v204
    %v206 = vrot.slane %v205, 2
    %v207 = vadd.f32 %v205, %v206
    %v208 = vrot.slane %v207, 1
    %v209 = vadd.f32 %v207, %v208
    %v210 = vmul.f32 %v202, 0.125
    %v211 = vmul.f32 %v209, 0.125
    %v212 = vld [vmem:[%s6] sm:$0xff]
    %v213 = vld [vmem:[%s6 + $0x8] sm:$0xff]
    %v214 = vld [vmem:[%s6 + $0x10] sm:$0xff]
    %v215 = vld [vmem:[%s6 + $0x18] sm:$0xff]
    %v216 = vld [vmem:[%s7] sm:$0xff]
    %v217 = vld [vmem:[%s7 + $0x8] sm:$0xff]
    %v218 = vld [vmem:[%s7 + $0x10] sm:$0xff]
    %v219 = vld [vmem:[%s7 + $0x18] sm:$0xff]
    %vm222 = vcmask 1041409
    %v223 = vsel %vm222, %v211, %v210
    %v224 = vsel %vm195, %v223, 0
    %226 = vmatpush.msra.mxu0 0.0
    %227 = vmatpush.msra.mxu0 0.0
    %228 = vmatpush.msra.mxu0 0.0
    %229 = vmatpush.msra.mxu0 0.0
    %230 = vmatpush.msra.mxu0 0.0
    %231 = vmatpush.msra.mxu0 0.0
    %232 = vmatpush.msra.mxu0 0.0
    %233 = vmatpush.msra.mxu0 0.0
    %234 = vmatpush.msra.mxu0 0.0
    %235 = vmatpush.msra.mxu0 0.0
    %236 = vmatpush.msra.mxu0 0.0
    %237 = vmatpush.msra.mxu0 0.0
    %238 = vmatpush.msra.mxu0 %v219
    %239 = vmatpush.msra.mxu0 %v218
    %240 = vmatpush.msra.mxu0 %v217
    %241 = vmatpush.msra.mxu0 %v216
    %242 = vmatmul.f32.gmra.mxu0 %v224
    %v243 = vpop.f32.mrf.mxu0
    %v244 = vadd.f32 0.0, %v243
    %245 = vdwg.mxu0
    %v247 = vsel %vm195, %v107, 0
    %249 = vmatpush.msra.mxu0 0.0
    %250 = vmatpush.msra.mxu0 0.0
    %251 = vmatpush.msra.mxu0 0.0
    %252 = vmatpush.msra.mxu0 0.0
    %253 = vmatpush.msra.mxu0 0.0
    %254 = vmatpush.msra.mxu0 0.0
    %255 = vmatpush.msra.mxu0 0.0
    %256 = vmatpush.msra.mxu0 0.0
    %257 = vmatpush.msra.mxu0 0.0
    %258 = vmatpush.msra.mxu0 0.0
    %259 = vmatpush.msra.mxu0 0.0
    %260 = vmatpush.msra.mxu0 0.0
    %261 = vmatpush.msra.mxu0 %v215
    %262 = vmatpush.msra.mxu0 %v214
    %263 = vmatpush.msra.mxu0 %v213
    %264 = vmatpush.msra.mxu0 %v212
    %265 = vmatmul.f32.gmra.mxu0 %v247
    %v266 = vpop.f32.mrf.mxu0
    %v267 = vadd.f32 %v244, %v266
    %268 = vdwg.mxu0
    %v269 = vld [vmem:[%s8] sm:$0x1]
    %v271 = vperm.slane %v269, 0
    %v273 = vadd.f32 %v267, %v271
    %v274 = vsub.f32 0.0, %v273
    %v275 = vmul.f32 %v274, 1.442695
    %v276 = vpow.pop %v275
    %v277 = vadd.f32 %v276, 1.0
    %v278 = vrcp.pop %v277
    %v279 = vmul.f32 %v273, %v278
    %v280 = vld [vmem:[%s9] sm:$0xff]
    %v281 = vld [vmem:[%s9 + $0x8] sm:$0xff]
    %v282 = vld [vmem:[%s9 + $0x10] sm:$0xff]
    %v283 = vld [vmem:[%s9 + $0x18] sm:$0xff]
    %v284 = vld [vmem:[%s9 + $0x20] sm:$0xff]
    %v285 = vld [vmem:[%s9 + $0x28] sm:$0xff]
    %v286 = vld [vmem:[%s9 + $0x30] sm:$0xff]
    %v287 = vld [vmem:[%s9 + $0x38] sm:$0xff]
    %v288 = vld [vmem:[%s10] sm:$0x1]
    %v290 = vperm.slane %v288, 0
    %vm292 = vcmask 523264
    %v294 = vsel %vm292, %v279, 0
    %296 = vmatpush.msra.mxu0 0.0
    %297 = vmatpush.msra.mxu0 0.0
    %298 = vmatpush.msra.mxu0 0.0
    %299 = vmatpush.msra.mxu0 0.0
    %300 = vmatpush.msra.mxu0 0.0
    %301 = vmatpush.msra.mxu0 0.0
    %302 = vmatpush.msra.mxu0 0.0
    %303 = vmatpush.msra.mxu0 0.0
    %304 = vmatpush.msra.mxu0 %v287
    %305 = vmatpush.msra.mxu0 %v286
    %306 = vmatpush.msra.mxu0 %v285
    %307 = vmatpush.msra.mxu0 %v284
    %308 = vmatpush.msra.mxu0 %v283
    %309 = vmatpush.msra.mxu0 %v282
    %310 = vmatpush.msra.mxu0 %v281
    %311 = vmatpush.msra.mxu0 %v280
    %312 = vmatmul.f32.gmra.mxu0 %v294
    %v313 = vpop.f32.mrf.mxu0
    %v314 = vadd.f32 %v290, %v313
    %315 = vdwg.mxu0
    %v316 = vld [vmem:[%s4] sm:$0x3]
    %v319 = vlaneseq
    %v320 = vand.u32 %v319, 127
    %v321 = vperm.slane %v185, %v320
    %v322 = vperm.slane %v186, %v320
    %v323 = vsel %vm222, %v322, %v321
    %v325 = vadd.f32 %v316, %v323
    %v326 = vld [vmem:[#allocation8] sm:$0x3]
    %v329 = vperm.slane %v193, %v320
    %v330 = vperm.slane %v194, %v320
    %v331 = vsel %vm222, %v330, %v329
    %v333 = vadd.f32 %v326, %v331
    %v334 = vadd.f32 %v314, 1.0
    %v335 = vmul.f32 %v334, %v325
    %337 = vrot.lane.b32.xlu0 %v314, 120
    %v338 = vpop.permute.xlu0 %337
    %v340 = vadd.f32 %v335, %v338
    %vm341 = vcmask 58368
    %342 = vst.msk [vmem:[#allocation10] sm:$0x3] %vm341, %v340
    %344 = vrot.lane.b32.xlu0 %v333, 16
    %v345 = vpop.permute.xlu0 %344
    %v347 = vmul.f32 %v334, %v345
    %v348 = vadd.f32 %v347, %v338
    %v349 = vmax.f32 %v348, 0.0
    %v350 = vand.u32 2147483647, %v348
    %v351 = vsub.f32 0.0, %v350
    %v352 = vmul.f32 %v351, 1.442695
    %v353 = vpow.pop %v352
    %v354 = vadd.f32 %v353, 1.0
    %v355 = vlog2.pop %v354
    %v356 = vmul.f32 %v355, 0.6931472
    %v357 = vadd.f32 %v349, %v356
    %359 = vrot.lane.b32.xlu0 %v357, 112
    %v360 = vpop.permute.xlu0 %359
    %362 = vst.msk [vmem:[#allocation11] sm:$0x3] %vm341, %v360
    // Predicated region
    $region62: #{tpu_custom_call.1} parent=1 // pred_check
      _
    $region63: #{tpu_custom_call.1} parent=1 // pred_check_branch
      %364 = sbr.rel (0) target = $region65
    $region64: #{tpu_custom_call.1} parent=1 // pred_region
      %366 = vsyncadd [#allocation4], 0
      %s368 = sshll.u32 [#allocation10], 4
      %s369 = int_to_ptr.vmem [resolvable:$true] %s368
      %s370 = sshll.u32 %s11, 4
      %s371 = int_to_ptr.hbm [resolvable:$true] %s370
      %373 = dma.vmem_to_hbm [thread:$0]  %s369, 32, %s371, [#allocation4]
    $region65: #{tpu_custom_call.1} parent=1 // pred_fallthru
      _
    // Predicated region
    $region66: #{tpu_custom_call.1} parent=1 // pred_check
      _
    $region67: #{tpu_custom_call.1} parent=1 // pred_check_branch
      %375 = sbr.rel (0) target = $region69
    $region68: #{tpu_custom_call.1} parent=1 // pred_region
      %377 = vsyncadd [#allocation12], 0
      %s379 = sshll.u32 [#allocation11], 4
      %s380 = int_to_ptr.vmem [resolvable:$true] %s379
      %s381 = sshll.u32 %s12, 4
      %s382 = int_to_ptr.hbm [resolvable:$true] %s381
      %384 = dma.vmem_to_hbm [thread:$0]  %s380, 32, %s382, [#allocation12]
    $region69: #{tpu_custom_call.1} parent=1 // pred_fallthru
      _
    // Predicated region
    $region70: #{tpu_custom_call.1} parent=1 // pred_check
      _
    $region71: #{tpu_custom_call.1} parent=1 // pred_check_branch
      %386 = sbr.rel (0) target = $region73
    $region72: #{tpu_custom_call.1} parent=1 // pred_region
      %388 = dma.done [#allocation4], 32
    $region73: #{tpu_custom_call.1} parent=1 // pred_fallthru
      _
    // Predicated region
    $region74: #{tpu_custom_call.1} parent=1 // pred_check
      _
    $region75: #{tpu_custom_call.1} parent=1 // pred_check_branch
      %390 = sbr.rel (0) target = $region77
    $region76: #{tpu_custom_call.1} parent=1 // pred_region
      %392 = dma.done [#allocation12], 32
    $region77: #{tpu_custom_call.1} parent=1 // pred_fallthru
      _
    %393 = vsyncpa [#allocation3], 1
    %394 = vsyncpa [#allocation6], 1
    %395 = vsyncpa [#allocation9], 1
    %396 = vsyncpa [#allocation4], 1
    %397 = vsyncpa [#allocation12], 1

</llo_original>
